<compile_context>
chip_gen: v7x
topology: tpu7x:2x2x1
jax: 0.10.0
libtpu: 0.0.40
codegen_flags: <defaults>
</compile_context>

<pallas_src>
import jax
import jax.numpy as jnp
from jax import lax
from jax.experimental import pallas as pl
from jax.experimental.pallas import tpu as pltpu

NEG_SLOPE = 0.01   # torch.nn.LeakyReLU default negative_slope
LANES = 128        # pad channel dims to the vreg lane width


def _round_up(v, m):
    return (v + m - 1) // m * m


def _leaky(x):
    return jnp.where(x > 0, x, NEG_SLOPE * x)


# ---------------------------------------------------------------------------
# Chomp1d: (B, C, L) -> (B, C, L - chomp_size).  Pure memory-bound copy,
# tiled so only a tile is VMEM-resident and DMA/compute is pipelined.
# ---------------------------------------------------------------------------
def chomp1d_pallas(x, chomp_size, last=True, row_tile=512, col_tile=512):
    B, C, L = x.shape
    Lout = L - chomp_size
    off = 0 if last else chomp_size
    R = B * C
    x2 = x.reshape(R, L)

    TR = row_tile if R > row_tile else R          # multiple of 8 when tiled

    col_tiled = (Lout >= col_tile) and (off % col_tile == 0)
    if col_tiled:
        # Chomp expressed purely in the input index_map: the chomped region is
        # never DMA'd, blocks are lane-dense (multiple of 128) -> unmasked vst
        # for all but the final ragged tile.
        TL = col_tile
        off_blocks = off // col_tile
        grid = (pl.cdiv(R, TR), pl.cdiv(Lout, TL))
        in_specs = [pl.BlockSpec((TR, TL), lambda i, j: (i, j + off_blocks))]
        out_spec = pl.BlockSpec((TR, TL), lambda i, j: (i, j))

        def kernel(x_ref, o_ref):
            o_ref[...] = x_ref[...]
    else:
        # Small L (or unaligned leading chomp): full-L blocks, row-tiled.
        # TODO(synk): a pl.Element offset on the L axis would let the
        # unaligned last=False case skip DMA of the chomped region too.
        grid = (pl.cdiv(R, TR),)
        in_specs = [pl.BlockSpec((TR, L), lambda i: (i, 0))]
        out_spec = pl.BlockSpec((TR, Lout), lambda i: (i, 0))

        def kernel(x_ref, o_ref):
            o_ref[...] = lax.slice(x_ref[...], (0, off), (TR, off + Lout))

    out = pl.pallas_call(
        kernel,
        out_shape=jax.ShapeDtypeStruct((R, Lout), x.dtype),
        grid=grid,
        in_specs=in_specs,
        out_specs=out_spec,
        compiler_params=pltpu.CompilerParams(
            dimension_semantics=("parallel",) * len(grid)),
    )(x2)
    return out.reshape(B, C, Lout)


# ---------------------------------------------------------------------------
# Fused TCN kernel: all blocks in one kernel, one grid step per batch element.
# ---------------------------------------------------------------------------
def _make_tcn_kernel(block_meta, K, Lp, C, PAD):
    def kernel(*refs):
        x_ref = refs[0]
        o_ref = refs[-2]
        hpad_ref = refs[-1]          # (PAD + Lp, C) f32 scratch, left zero pad
        w_refs = refs[1:-2]

        # Zero the causal left pad once per grid step (aligned, cheap).
        hpad_ref[pl.ds(0, PAD), :] = jnp.zeros((PAD, C), jnp.float32)

        def causal_conv(v, w_ref, b_ref, dil):
            # v: (Lp, C) f32.  Dilated causal conv == Conv1d(pad=(K-1)*dil)
            # followed by Chomp1d: tap j multiplies v delayed by j*dil, with
            # zeros before t=0.  The delay is a static sublane-offset read
            # from the left-zero-padded scratch (no shift matmuls, no masks);
            # the K taps accumulate into one f32 result via K MXU dots.
            hpad_ref[pl.ds(PAD, Lp), :] = v                 # aligned store
            acc = jnp.dot(v.astype(jnp.bfloat16), w_ref[0],
                          preferred_element_type=jnp.float32)
            for j in range(1, K):
                tap = hpad_ref[pl.ds(PAD - j * dil, Lp), :]  # causal shift
                acc = acc + jnp.dot(tap.astype(jnp.bfloat16), w_ref[j],
                                    preferred_element_type=jnp.float32)
            return acc + b_ref[...]

        h = x_ref[0].astype(jnp.float32)                    # (Lp, C)
        idx = 0
        for blk in block_meta:
            W1, b1, W2, b2 = w_refs[idx:idx + 4]
            idx += 4
            if blk['has_res']:
                Wr, br = w_refs[idx:idx + 2]
                idx += 2
            dil = blk['dil']

            h1 = _leaky(causal_conv(h, W1, b1, dil))        # conv1 + LeakyReLU
            h2 = _leaky(causal_conv(h1, W2, b2, dil))       # conv2 + LeakyReLU
            if blk['has_res']:                              # 1x1 conv residual
                res = jnp.dot(h.astype(jnp.bfloat16), Wr[...],
                              preferred_element_type=jnp.float32) + br[...]
            else:                                           # identity residual
                res = h
            h = h2 + res
            if blk['final']:
                h = _leaky(h)

        o_ref[0] = h.astype(o_ref.dtype)                    # lane-dense store
    return kernel


# ------------------------- parameter packing helpers -----------------------
def _pad_mat(m, rows, cols):
    out = jnp.zeros((rows, cols), jnp.float32)
    return out.at[:m.shape[0], :m.shape[1]].set(m.astype(jnp.float32))


def _pad_bias(b, cols):
    out = jnp.zeros((1, cols), jnp.float32)
    return out.at[0, :b.shape[0]].set(b.astype(jnp.float32))


def _stack_conv_weight(w, K, C):
    # torch layout (Cout, Cin, K).  Tap j multiplies the input delayed by
    # j*dilation, i.e. torch tap index K-1-j, as a (Cin, Cout) right factor.
    mats = [_pad_mat(jnp.transpose(w[:, :, K - 1 - j]), C, C) for j in range(K)]
    return jnp.stack(mats, axis=0).astype(jnp.bfloat16)     # (K, C, C)


# ------------------------------ TCN forward --------------------------------
def tcn_forward_pallas(x, params, cfgs, kernel_size):
    """x: (B, T, D) -> (B, T, out_channels); whole network in ONE kernel."""
    B, L, Din = x.shape
    K = kernel_size
    assert K >= 2
    C = LANES
    Lp = _round_up(L, 8)
    max_dil = max(c[2] for c in cfgs)
    PAD = _round_up((K - 1) * max_dil, 8)

    # channel-pad to 128 lanes, sublane-pad L, matmul operands in bf16
    xp = jnp.zeros((B, Lp, C), jnp.float32)
    xp = xp.at[:, :L, :Din].set(x.astype(jnp.float32)).astype(jnp.bfloat16)

    args = [xp]
    in_specs = [pl.BlockSpec((1, Lp, C), lambda b: (b, 0, 0))]
    meta = []
    for (cin, cout, dil, final), prm in zip(cfgs, params):
        has_res = 'wres' in prm
        args += [_stack_conv_weight(prm['w1'], K, C), _pad_bias(prm['b1'], C),
                 _stack_conv_weight(prm['w2'], K, C), _pad_bias(prm['b2'], C)]
        in_specs += [pl.BlockSpec((K, C, C), lambda b: (0, 0, 0)),
                     pl.BlockSpec((1, C), lambda b: (0, 0)),
                     pl.BlockSpec((K, C, C), lambda b: (0, 0, 0)),
                     pl.BlockSpec((1, C), lambda b: (0, 0))]
        if has_res:
            args += [_pad_mat(jnp.transpose(prm['wres'][:, :, 0]), C, C
                              ).astype(jnp.bfloat16),
                     _pad_bias(prm['bres'], C)]
            in_specs += [pl.BlockSpec((C, C), lambda b: (0, 0)),
                         pl.BlockSpec((1, C), lambda b: (0, 0))]
        meta.append(dict(has_res=has_res, final=final, dil=dil))

    # VMEM budget: resident weights + double-buffered I/O tiles + scratch.
    wbytes = sum(int(a.size) * a.dtype.itemsize for a in args[1:])
    act_bytes = Lp * C * (2 * 2 + 2 * 4)      # bf16 in tile x2 + f32 out tile x2
    scratch_bytes = (PAD + Lp) * C * 4
    vmem_limit = int(min(max(4 * (wbytes + act_bytes + scratch_bytes), 8 << 20),
                         64 << 20))

    out = pl.pallas_call(
        _make_tcn_kernel(meta, K, Lp, C, PAD),
        out_shape=jax.ShapeDtypeStruct((B, Lp, C), jnp.float32),
        grid_spec=pltpu.PrefetchScalarGridSpec(
            num_scalar_prefetch=0,
            grid=(B,),
            in_specs=in_specs,
            out_specs=pl.BlockSpec((1, Lp, C), lambda b: (b, 0, 0)),
            scratch_shapes=[pltpu.VMEM((PAD + Lp, C), jnp.float32)]),
        compiler_params=pltpu.CompilerParams(
            dimension_semantics=("parallel",),
            vmem_limit_bytes=vmem_limit),
    )(*args)

    out_channels = cfgs[-1][1]
    return out[:, :L, :out_channels]


# ------------------------- parameter construction --------------------------
def init_tcn_params(key, in_channels, out_channels, kernel_size, channels, layers):
    """Deterministic synthetic params mirroring the torch module's shapes."""
    cfgs = []
    dil = 1
    for i in range(layers):
        cin = in_channels if i == 0 else channels
        cfgs.append((cin, channels, dil, False))
        dil *= 2
    cfgs.append((channels, out_channels, dil, True))   # final block

    def u(k, shape, fan_in):
        bound = 1.0 / (fan_in ** 0.5)
        return jax.random.uniform(k, shape, jnp.float32, -bound, bound)

    params = []
    for (cin, cout, _, _) in cfgs:
        key, k1, k2, k3, k4, k5, k6 = jax.random.split(key, 7)
        prm = {
            'w1': u(k1, (cout, cin, kernel_size), cin * kernel_size),
            'b1': u(k2, (cout,), cin * kernel_size),
            'w2': u(k3, (cout, cout, kernel_size), cout * kernel_size),
            'b2': u(k4, (cout,), cout * kernel_size),
        }
        if cin != cout:
            prm['wres'] = u(k5, (cout, cin, 1), cin)
            prm['bres'] = u(k6, (cout,), cin)
        params.append(prm)
    return params, cfgs


# --------------------------- pure-JAX reference ----------------------------
def _q_bf16(v):
    # Match the kernel's bf16 matmul operands (accumulation stays f32).
    return v.astype(jnp.bfloat16).astype(jnp.float32)


def _ref_causal_conv(x, w, b, dilation):
    K = w.shape[2]
    p = (K - 1) * dilation
    out = lax.conv_general_dilated(
        _q_bf16(x), jnp.transpose(_q_bf16(w), (2, 1, 0)),
        window_strides=(1,), padding=[(p, 0)], rhs_dilation=(dilation,),
        dimension_numbers=('NWC', 'WIO', 'NWC'),
        preferred_element_type=jnp.float32)
    return out + b[None, None, :].astype(jnp.float32)


def tcn_forward_ref(x, params, cfgs, kernel_size):
    h = x.astype(jnp.float32)
    for (cin, cout, dil, final), prm in zip(cfgs, params):
        oc = _leaky(_ref_causal_conv(h, prm['w1'], prm['b1'], dil))
        oc = _leaky(_ref_causal_conv(oc, prm['w2'], prm['b2'], dil))
        res = _ref_causal_conv(h, prm['wres'], prm['bres'], 1) if 'wres' in prm else h
        y = oc + res
        if final:
            y = _leaky(y)
        h = y
    return h


if __name__ == "__main__":
    key = jax.random.PRNGKey(0)
    B, T, D = 2, 16, 4
    in_channels, out_channels, kernel_size, channels, layers = D, 6, 3, 8, 2

    kx, kp, kc, kb = jax.random.split(key, 4)
    x = jax.random.normal(kx, (B, T, D), jnp.float32)
    params, cfgs = init_tcn_params(kp, in_channels, out_channels,
                                   kernel_size, channels, layers)

    # --- Chomp1d (the module spec), small shapes --------------------------
    xc = jax.random.normal(kc, (2, 4, 16), jnp.float32)
    yc = jax.block_until_ready(chomp1d_pallas(xc, 2, last=True))
    assert yc.shape == (2, 4, 14), yc.shape
    assert jnp.array_equal(yc, xc[:, :, :-2]), "chomp(last=True) mismatch"
    yc2 = jax.block_until_ready(chomp1d_pallas(xc, 3, last=False))
    assert yc2.shape == (2, 4, 13), yc2.shape
    assert jnp.array_equal(yc2, xc[:, :, 3:]), "chomp(last=False) mismatch"

    # --- Chomp1d, lane-aligned shapes exercising the index_map-chomp path --
    xb = jax.random.normal(kb, (2, 8, 1536), jnp.float32)
    yb = jax.block_until_ready(chomp1d_pallas(xb, 512, last=True))
    assert jnp.array_equal(yb, xb[:, :, :-512]), "tiled chomp(last=True) mismatch"
    yb2 = jax.block_until_ready(chomp1d_pallas(xb, 512, last=False))
    assert jnp.array_equal(yb2, xb[:, :, 512:]), "tiled chomp(last=False) mismatch"

    # --- fused TCN forward (Conv1d + Chomp1d causal blocks) ----------------
    y = jax.block_until_ready(tcn_forward_pallas(x, params, cfgs, kernel_size))
    y_ref = tcn_forward_ref(x, params, cfgs, kernel_size)
    assert y.shape == (B, T, out_channels), y.shape
    assert jnp.allclose(y, y_ref, rtol=1e-3, atol=1e-3), "mismatch vs reference"
    print("KERNEL_OK")
</pallas_src>

<mosaic_0001>
module attributes {stable_mosaic.version = 11 : i64} {
  func.func @kernel(%arg0: i32, %arg1: memref<8x16xf32, #tpu.memory_space<vmem>>, %arg2: memref<8x14xf32, #tpu.memory_space<vmem>>) attributes {dimension_semantics = [#tpu.dimension_semantics<parallel>], iteration_bounds = array<i64: 1>, scalar_prefetch = 0 : i64, scratch_operands = 0 : i64, tpu.core_type = #tpu.core_type<tc>, window_params = [{transform_indices = @transform_0, window_bounds = array<i64: 8, 16>}, {transform_indices = @transform_1, window_bounds = array<i64: 8, 14>}]} {
    %c0 = arith.constant 0 : index
    %c0_0 = arith.constant 0 : index
    %0 = vector.load %arg1[%c0, %c0_0] : memref<8x16xf32, #tpu.memory_space<vmem>>, vector<8x16xf32>
    %1 = vector.extract_strided_slice %0 {offsets = [0, 0], sizes = [8, 14], strides = [1, 1]} : vector<8x16xf32> to vector<8x14xf32>
    %c0_1 = arith.constant 0 : index
    %c0_2 = arith.constant 0 : index
    %2 = vector.load %arg2[%c0_1, %c0_2] : memref<8x14xf32, #tpu.memory_space<vmem>>, vector<8x14xf32>
    tpu.vector_store %arg2[%c0_1, %c0_2], %1 {strides = array<i32>} : memref<8x14xf32, #tpu.memory_space<vmem>>, vector<8x14xf32>,
    return
  }
  func.func @transform_0(%arg0: i32) -> (i32, i32) {
    %c0_i32 = arith.constant 0 : i32
    %c0_i32_0 = arith.constant 0 : i32
    return %arg0, %c0_i32 : i32, i32
  }
  func.func @transform_1(%arg0: i32) -> (i32, i32) {
    %c0_i32 = arith.constant 0 : i32
    %c0_i32_0 = arith.constant 0 : i32
    return %arg0, %c0_i32 : i32, i32
  }
}

</mosaic_0001>

<llo_original>
// kernel: tpu_custom_call.1
$region0: #{tpu_custom_call.1}
  #allocation0 [shape = 'u32[]', space=smem, size = 0x4, offset = 0x4, fixed_abs, tag = 'smem constant byte address 0x4 - core index']
  #allocation1 [shape = 'u32[144,128]{1,0:T(1,128)}', space=vmem, size = 0x12000, scoped, tag = 'internal scratch']
  %s0 = inlined_call_operand.hbm [shape: f32[8,16], index: 0, kind: input, shape index: {}]
  %s1 = inlined_call_operand.hbm [shape: f32[8,14], index: 1, kind: output, shape index: {}]
  %s2 = sld [smem:[#allocation0]]
  $region18: #{tpu_custom_call.1} parent=0
    _
  %s4 = ssub.s32 1, %s2
  %s5 = scalar_select 0, %s4, %s2
  $region1: #{tpu_custom_call.1} parent=0
    #allocation2 [shape = 'u8[4096]{0}', space=vmem, size = 0x1000, scoped, tag = 'input window, operand 0, single buffered']
    #allocation3 [shape = 's32[1]{0}', space=sflag, size = 0x4, scoped, tag = 'scoped memory for tpu_custom_call.1']
    #allocation4 [shape = 's32[1]{0}', space=sflag, size = 0x4, scoped, tag = 'scoped memory for tpu_custom_call.1']
    #allocation5 [shape = 'u8[4096]{0}', space=vmem, size = 0x1000, scoped, tag = 'output window, operand 0, single buffered']
    %6 = vsyncpa [#allocation3], 0
    %7 = vsyncpa [#allocation4], 0
    // Predicated region
    $region2: #{tpu_custom_call.1} parent=1 // pred_check
      _
    $region3: #{tpu_custom_call.1} parent=1 // pred_check_branch
      %9 = sbr.rel (0) target = $region5
    $region4: #{tpu_custom_call.1} parent=1 // pred_region
      %s11 = ssub.s32 128, 128
      %12 = vsyncadd [#allocation3], %s11
      %s14 = sshll.u32 [#allocation2], 4
      %s15 = int_to_ptr.vmem [resolvable:$true] %s14
      %17 = dma.hbm_to_vmem [thread:$0]  %s0, 128, %s15, [#allocation3]
    $region5: #{tpu_custom_call.1} parent=1 // pred_fallthru
      _
    // Predicated region
    $region6: #{tpu_custom_call.1} parent=1 // pred_check
      _
    $region7: #{tpu_custom_call.1} parent=1 // pred_check_branch
      %19 = sbr.rel (0) target = $region9
    $region8: #{tpu_custom_call.1} parent=1 // pred_region
      %20 = dma.done [#allocation3], 128
    $region9: #{tpu_custom_call.1} parent=1 // pred_fallthru
      _
    %v21 = vld [vmem:[#allocation2] sm:$0xff]
    %vm22 = vcmask 113664
    %23 = vst.msk [vmem:[#allocation5] sm:$0xff] %vm22, %v21
    // Predicated region
    $region10: #{tpu_custom_call.1} parent=1 // pred_check
      _
    $region11: #{tpu_custom_call.1} parent=1 // pred_check_branch
      %25 = sbr.rel (0) target = $region13
    $region12: #{tpu_custom_call.1} parent=1 // pred_region
      %s27 = ssub.s32 128, 128
      %28 = vsyncadd [#allocation4], %s27
      %s30 = sshll.u32 [#allocation5], 4
      %s31 = int_to_ptr.vmem [resolvable:$true] %s30
      %33 = dma.vmem_to_hbm [thread:$0]  %s31, 128, %s1, [#allocation4]
    $region13: #{tpu_custom_call.1} parent=1 // pred_fallthru
      _
    // Predicated region
    $region14: #{tpu_custom_call.1} parent=1 // pred_check
      _
    $region15: #{tpu_custom_call.1} parent=1 // pred_check_branch
      %35 = sbr.rel (0) target = $region17
    $region16: #{tpu_custom_call.1} parent=1 // pred_region
      %36 = dma.done [#allocation4], 128
    $region17: #{tpu_custom_call.1} parent=1 // pred_fallthru
      _
    %37 = vsyncpa [#allocation3], 1
    %38 = vsyncpa [#allocation4], 1

</llo_original>
